<compile_context>
chip_gen: v5e
topology: v5e:2x2
jax: 0.10.0
libtpu: 0.0.40
codegen_flags: <defaults>
</compile_context>

<pallas_src>
import functools
import math

import jax
import jax.numpy as jnp
import numpy as np
from jax.experimental import pallas as pl
from jax.experimental.pallas import tpu as pltpu

LANE = 128
SUBLANE = 8


# ---------------------------------------------------------------------------
# Shape bookkeeping (mirrors torch.Tensor.view's shape resolution).
# ---------------------------------------------------------------------------
def _resolve_view_shape(total: int, shape) -> tuple:
    shape = list(shape)
    neg = [i for i, s in enumerate(shape) if s == -1]
    assert len(neg) <= 1, "at most one -1 allowed in view shape"
    if neg:
        known = 1
        for i, s in enumerate(shape):
            if i != neg[0]:
                known *= s
        assert known > 0 and total % known == 0, "view shape incompatible with input size"
        shape[neg[0]] = total // known
    assert math.prod(shape) == total, "view shape incompatible with input size"
    return tuple(shape)


def _round_up(x: int, m: int) -> int:
    return ((x + m - 1) // m) * m


# ---------------------------------------------------------------------------
# Primary kernel: one HBM->HBM DMA.  No VMEM staging, no alignment limits.
# ---------------------------------------------------------------------------
def _dma_copy_kernel(x_hbm, o_hbm, sem):
    cp = pltpu.make_async_copy(x_hbm, o_hbm, sem)
    cp.start()
    cp.wait()


@functools.partial(jax.jit, static_argnames=("out_shape",))
def _dma_reshape(x, *, out_shape):
    total = x.size
    itemsize = jnp.dtype(x.dtype).itemsize
    x_flat = x.reshape(total)  # metadata-only under jit (bitcast)
    out_flat = pl.pallas_call(
        _dma_copy_kernel,
        out_shape=jax.ShapeDtypeStruct((total,), x.dtype),
        in_specs=[pl.BlockSpec(memory_space=pl.ANY)],
        out_specs=pl.BlockSpec(memory_space=pl.ANY),
        scratch_shapes=[pltpu.SemaphoreType.DMA],
        cost_estimate=pl.CostEstimate(
            flops=0, transcendentals=0, bytes_accessed=2 * total * itemsize
        ),
    )(x_flat)
    return out_flat.reshape(out_shape)  # metadata-only under jit (bitcast)


# ---------------------------------------------------------------------------
# Fallback kernel: pipelined lane-dense VMEM tile copy (chip-aware block size).
# ---------------------------------------------------------------------------
def _tile_copy_kernel(x_ref, o_ref):
    o_ref[...] = x_ref[...]


def _pick_block_bytes() -> int:
    """Chip-aware per-operand block size (2 pipeline buffers per operand)."""
    try:
        vmem = int(pltpu.get_tpu_info().vmem_capacity_bytes)
    except Exception:
        vmem = 0
    if vmem and vmem <= (64 << 20):
        return 4 << 20  # v7x: 3.2 TB/s HBM -> bigger blocks amortize per-step cost
    return 2 << 20      # v5e/v6e (128 MiB VMEM) or unknown: safe & already saturating


def _pick_width(total: int) -> int:
    """Widest lane-dense row width (multiple of 128) that divides the total."""
    for w in (2048, 1024, 512, 256, LANE):
        if total % w == 0:
            return w
    return 0


@functools.partial(jax.jit, static_argnames=("out_shape",), donate_argnums=(0,))
def _tiled_reshape(x, *, out_shape):
    total = x.size
    itemsize = jnp.dtype(x.dtype).itemsize
    width = _pick_width(total)
    if width == 0:
        # Not lane-factorable: a contiguous reshape is metadata-only anyway.
        return x.reshape(out_shape)

    rows = total // width
    gran = SUBLANE * max(1, 4 // max(1, itemsize))  # packed-sublane granularity
    target_rows = _round_up(max(gran, _pick_block_bytes() // (width * itemsize)), gran)
    if rows <= gran:
        block_rows = rows                               # single full-extent block
    elif target_rows >= rows:
        block_rows = _round_up(pl.cdiv(rows, 2), gran)  # >=2 steps feeds both v7x cores
    else:
        block_rows = target_rows
    grid = (pl.cdiv(rows, block_rows),)  # ragged last block is masked by Pallas

    x2d = x.reshape(rows, width)  # bitcast under jit
    out2d = pl.pallas_call(
        _tile_copy_kernel,
        out_shape=jax.ShapeDtypeStruct((rows, width), x.dtype),
        grid=grid,
        in_specs=[pl.BlockSpec((block_rows, width), lambda i: (i, 0))],
        out_specs=pl.BlockSpec((block_rows, width), lambda i: (i, 0)),
        # With jit donation the alias is real and the output allocation is elided.
        input_output_aliases={0: 0},
        compiler_params=pltpu.CompilerParams(
            dimension_semantics=("parallel",),
            vmem_limit_bytes=32 << 20,
        ),
        cost_estimate=pl.CostEstimate(
            flops=0, transcendentals=0, bytes_accessed=2 * total * itemsize
        ),
    )(x2d)
    return out2d.reshape(out_shape)


# ---------------------------------------------------------------------------
# Public wrapper (mirrors the PyTorch module).
# ---------------------------------------------------------------------------
def reshape_forward(x: jax.Array, shape) -> jax.Array:
    """Pallas-backed equivalent of Reshape(shape)(x) == x.view(shape)."""
    out_shape = _resolve_view_shape(x.size, shape)
    if x.size == 0:
        return x.reshape(out_shape)  # nothing to copy
    try:
        return _dma_reshape(x, out_shape=out_shape)
    except Exception:
        # TODO(synk): fallback only if direct HBM->HBM DMA lowering is unavailable
        # on this backend; the tiled VMEM copy is equivalent but slightly slower.
        return _tiled_reshape(x, out_shape=out_shape)


class Reshape:
    """JAX/Pallas mirror of the PyTorch Reshape module (no parameters)."""

    def __init__(self, shape):
        self.shape = tuple(shape)

    def __call__(self, x):
        return reshape_forward(x, self.shape)


if __name__ == "__main__":
    key = jax.random.PRNGKey(0)
    k1, k2, k3 = jax.random.split(key, 3)

    # hcvarr usage: flatten conv features (N, C, H, W) -> (N, C*H*W) before FC.
    x = jax.random.normal(k1, (2, 4, 16, 16), dtype=jnp.float32)
    ref = np.asarray(jax.device_get(x)).reshape(2, 4 * 16 * 16)
    out = jax.block_until_ready(Reshape((-1, 4 * 16 * 16))(x))
    assert out.shape == (2, 1024) and out.dtype == x.dtype
    assert np.array_equal(np.asarray(jax.device_get(out)), ref)

    # Odd total (not a multiple of 128): DMA path has no alignment constraints.
    x2 = jax.random.normal(k2, (2, 3, 5, 7), dtype=jnp.float32)
    ref2 = np.asarray(jax.device_get(x2)).reshape(6, 35)
    out2 = jax.block_until_ready(Reshape((6, 35))(x2))
    assert out2.shape == (6, 35) and out2.dtype == x2.dtype
    assert np.array_equal(np.asarray(jax.device_get(out2)), ref2)

    # Packed dtype (bf16) flatten.
    x3 = jax.random.normal(k3, (3, 8, 16, 16), dtype=jnp.bfloat16)
    ref3 = np.asarray(jax.device_get(x3)).reshape(3, 8 * 16 * 16)
    out3 = jax.block_until_ready(Reshape((-1, 8 * 16 * 16))(x3))
    assert out3.shape == (3, 2048) and out3.dtype == jnp.bfloat16
    assert np.array_equal(np.asarray(jax.device_get(out3)), ref3)

    print("KERNEL_OK")
</pallas_src>

<mosaic_0001>
module attributes {stable_mosaic.version = 11 : i64} {
  func.func @_tile_copy_kernel(%arg0: i32, %arg1: memref<1x2048xf32, #tpu.memory_space<vmem>>, %arg2: memref<1x2048xf32, #tpu.memory_space<vmem>>) attributes {dimension_semantics = [#tpu.dimension_semantics<parallel>], iteration_bounds = array<i64: 1>, scalar_prefetch = 0 : i64, scratch_operands = 0 : i64, tpu.core_type = #tpu.core_type<tc>, window_params = [{transform_indices = @transform_0, window_bounds = array<i64: 1, 2048>}, {transform_indices = @transform_1, window_bounds = array<i64: 1, 2048>}]} {
    %c0 = arith.constant 0 : index
    %c0_0 = arith.constant 0 : index
    %0 = vector.load %arg1[%c0, %c0_0] : memref<1x2048xf32, #tpu.memory_space<vmem>>, vector<1x2048xf32>
    %c0_1 = arith.constant 0 : index
    %c0_2 = arith.constant 0 : index
    %1 = vector.load %arg2[%c0_1, %c0_2] : memref<1x2048xf32, #tpu.memory_space<vmem>>, vector<1x2048xf32>
    tpu.vector_store %arg2[%c0_1, %c0_2], %0 {strides = array<i32>} : memref<1x2048xf32, #tpu.memory_space<vmem>>, vector<1x2048xf32>,
    return
  }
  func.func @transform_0(%arg0: i32) -> (i32, i32) {
    %c0_i32 = arith.constant 0 : i32
    %c0_i32_0 = arith.constant 0 : i32
    return %arg0, %c0_i32 : i32, i32
  }
  func.func @transform_1(%arg0: i32) -> (i32, i32) {
    %c0_i32 = arith.constant 0 : i32
    %c0_i32_0 = arith.constant 0 : i32
    return %arg0, %c0_i32 : i32, i32
  }
}

</mosaic_0001>

<llo_original>
// kernel: _tiled_reshape.1
$region0: #{_tiled_reshape.1}
  #allocation0 [shape = 'u32[]', space=smem, size = 0x4, offset = 0x4, fixed_abs, tag = 'smem constant byte address 0x4 - core index']
  #allocation1 [shape = 'u32[72,128]{1,0:T(1,128)}', space=vmem, size = 0x9000, scoped, tag = 'internal scratch']
  %s0 = inlined_call_operand.vmem [shape: f32[1,2048], index: 0, kind: input, shape index: {}, may-alias: {0,1}]
  %s1 = inlined_call_operand.vmem [shape: f32[1,2048], index: 1, kind: output, shape index: {}, may-alias: {0,1}]
  %s2 = sld [smem:[#allocation0]]
  $region14: #{_tiled_reshape.1} parent=0
    _
  %s4 = ssub.s32 1, %s2
  %s5 = scalar_select 0, %s4, %s2
  // Predicated region
  $region2: #{_tiled_reshape.1} parent=0 // pred_check
    _
  $region3: #{_tiled_reshape.1} parent=0 // pred_check_branch
    %7 = sbr.rel (0) target = $region5
  $region4: #{_tiled_reshape.1} parent=0 // pred_region
    _
  $region5: #{_tiled_reshape.1} parent=0 // pred_fallthru
    _
  %v8 = vld [vmem:[%s0] sm:$0xff]
  %v9 = vld [vmem:[%s0 + $0x8] sm:$0xff]
  %10 = vst [vmem:[%s1] sm:$0xff] %v8
  %11 = vst [vmem:[%s1 + $0x8] sm:$0xff] %v9
  // Predicated region
  $region6: #{_tiled_reshape.1} parent=0 // pred_check
    _
  $region7: #{_tiled_reshape.1} parent=0 // pred_check_branch
    %13 = sbr.rel (0) target = $region9
  $region8: #{_tiled_reshape.1} parent=0 // pred_region
    _
  $region9: #{_tiled_reshape.1} parent=0 // pred_fallthru
    _
  // Predicated region
  $region10: #{_tiled_reshape.1} parent=0 // pred_check
    _
  $region11: #{_tiled_reshape.1} parent=0 // pred_check_branch
    %15 = sbr.rel (0) target = $region13
  $region12: #{_tiled_reshape.1} parent=0 // pred_region
    _
  $region13: #{_tiled_reshape.1} parent=0 // pred_fallthru
    _

</llo_original>
